<compile_context>
chip_gen: v7x
topology: tpu7x:2x2x1
jax: 0.10.0
libtpu: 0.0.40
codegen_flags: <defaults>
</compile_context>

<pallas_src>
import jax
import jax.numpy as jnp
from jax import lax
from jax.experimental import pallas as pl
from jax.experimental.pallas import tpu as pltpu


def _basic_block_kernel(x_ref, b1_ref, s1_ref, c1_ref, b2_ref, s2_ref, c2_ref,
                        o_ref):
    """Fused conv1+bn1+relu -> conv2+bn2 -> +identity -> relu.

    x_ref:  (NB, H, W*Cin)       f32, lane-dense flattened NHWC input block
    b1_ref: (3, W*Cin, W*Cout)   bf16 band weights for conv1 (pure conv taps)
    s1_ref: (1, W*Cout)          f32 BN1 scale per flattened output column
    c1_ref: (1, W*Cout)          f32 BN1 bias
    b2_ref: (3, W*Cout, W*Cout)  bf16 band weights for conv2
    s2_ref, c2_ref: (1, W*Cout)  f32 BN2 scale / bias
    o_ref:  (NB, H, W*Cout)
    """
    NB, H, WCin = x_ref.shape
    WCout = o_ref.shape[2]
    R = NB * H                                      # rows fed to the MXU

    x_bf = x_ref[...].reshape(R, WCin).astype(jnp.bfloat16)   # single cast

    # Seam masks: rows whose dy=0 / dy=2 tap would cross an image edge
    # (row 0 / row H-1 of every image in the block).
    row = lax.broadcasted_iota(jnp.int32, (R, WCout), 0)
    has_above = (row % H) != 0
    has_below = (row % H) != (H - 1)

    def conv3x3_band(inp_bf, band_ref):
        # y_dy[r] = inp[r] @ band[dy];  out[r] = y0[r-1] + y1[r] + y2[r+1]
        out = jnp.dot(inp_bf, band_ref[1], preferred_element_type=jnp.float32)
        y0 = jnp.dot(inp_bf, band_ref[0], preferred_element_type=jnp.float32)
        y2 = jnp.dot(inp_bf, band_ref[2], preferred_element_type=jnp.float32)
        out = out + jnp.where(has_above, pltpu.roll(y0, shift=1, axis=0), 0.0)
        out = out + jnp.where(has_below,
                              pltpu.roll(y2, shift=R - 1, axis=0), 0.0)
        return out

    # conv1 -> bn1 (f32 epilogue) -> relu
    h1 = conv3x3_band(x_bf, b1_ref)
    h1 = jnp.maximum(h1 * s1_ref[...] + c1_ref[...], 0.0)

    # conv2 -> bn2 -> + identity residual -> relu (intermediate never hits HBM)
    h2 = conv3x3_band(h1.astype(jnp.bfloat16), b2_ref)
    out = h2 * s2_ref[...] + c2_ref[...] + x_ref[...].reshape(R, WCin)
    o_ref[...] = jnp.maximum(out, 0.0).reshape(NB, H, WCout).astype(o_ref.dtype)


def _make_band(w, W):
    """Fold a 3x3 conv (stride=1, pad=1) along W into band weight matrices.

    w: (3, 3, Cin, Cout) HWIO.  Returns (3, W*Cin, W*Cout): for kernel row dy,
    flattened_input_row @ band[dy] implements the 1-D conv along W with zero
    padding (out-of-range taps simply have zero band entries).
    """
    Cin, Cout = w.shape[2], w.shape[3]
    xi = jnp.arange(W)[:, None, None]                # input column
    xo = jnp.arange(W)[None, :, None]                # output column
    dx = jnp.arange(3)[None, None, :]                # kernel column
    sel = (xi - xo + 1 == dx).astype(w.dtype)        # (W, W, 3) one-hot band
    band = jnp.einsum('iox,yxcd->yicod', sel, w)     # (3, W, Cin, W, Cout)
    return band.reshape(3, W * Cin, W * Cout)


def fold_bn(gamma, beta, mean, var, eps=1e-5):
    scale = gamma / jnp.sqrt(var + eps)
    bias = beta - mean * scale
    return scale, bias


def basic_block_forward(x, params, *, images_per_block=1):
    """BasicBlock forward (stride=1, downsample=None). x: (N, H, W, Cin) NHWC.

    images_per_block: 1 (default) keeps a batch-wide 'parallel' grid axis so
    v7x's two TensorCores each take an image; set to N on single-TC chips
    (v5e/v6e) to fold the whole batch into one block (fewer grid steps,
    doubled matmul M; seam masking in-kernel keeps it correct).
    """
    N, H, W, Cin = x.shape
    w1, w2 = params["w1"], params["w2"]
    Cout = w1.shape[-1]
    assert Cin == Cout, "identity skip requires inplanes == planes"
    NB = images_per_block
    assert N % NB == 0

    s1, b1 = fold_bn(params["bn1_gamma"], params["bn1_beta"],
                     params["bn1_mean"], params["bn1_var"])
    s2, b2 = fold_bn(params["bn2_gamma"], params["bn2_beta"],
                     params["bn2_mean"], params["bn2_var"])

    # Weight preprocessing (tiny, once per call): pure-conv band matrices in
    # bf16 for the MXU; BN scale/bias stay f32 and are applied in the kernel's
    # f32 epilogue (no bf16 rounding of the BN scale).
    band1 = _make_band(w1.astype(jnp.float32), W).astype(jnp.bfloat16)
    band2 = _make_band(w2.astype(jnp.float32), W).astype(jnp.bfloat16)
    scale1 = jnp.tile(s1, W).reshape(1, W * Cout).astype(jnp.float32)
    bias1 = jnp.tile(b1, W).reshape(1, W * Cout).astype(jnp.float32)
    scale2 = jnp.tile(s2, W).reshape(1, W * Cout).astype(jnp.float32)
    bias2 = jnp.tile(b2, W).reshape(1, W * Cout).astype(jnp.float32)

    # Lane-dense activation layout: (N, H, W*C)  (free reshape; W*C = 128 here).
    x_flat = x.reshape(N, H, W * Cin)

    out_flat = pl.pallas_call(
        _basic_block_kernel,
        out_shape=jax.ShapeDtypeStruct((N, H, W * Cout), x.dtype),
        grid=(N // NB,),
        in_specs=[
            pl.BlockSpec((NB, H, W * Cin), lambda n: (n, 0, 0)),
            pl.BlockSpec((3, W * Cin, W * Cout), lambda n: (0, 0, 0)),
            pl.BlockSpec((1, W * Cout), lambda n: (0, 0)),
            pl.BlockSpec((1, W * Cout), lambda n: (0, 0)),
            pl.BlockSpec((3, W * Cout, W * Cout), lambda n: (0, 0, 0)),
            pl.BlockSpec((1, W * Cout), lambda n: (0, 0)),
            pl.BlockSpec((1, W * Cout), lambda n: (0, 0)),
        ],
        out_specs=pl.BlockSpec((NB, H, W * Cout), lambda n: (n, 0, 0)),
        compiler_params=pltpu.CompilerParams(
            dimension_semantics=("parallel",)),
    )(x_flat, band1, scale1, bias1, band2, scale2, bias2)

    return out_flat.reshape(N, H, W, Cout)


def _reference_forward(x, params):
    """Pure-JAX reference (lax.conv, f32) for correctness check."""
    def conv(h, w):
        return lax.conv_general_dilated(
            h, w, window_strides=(1, 1), padding="SAME",
            dimension_numbers=("NHWC", "HWIO", "NHWC"))
    s1, b1 = fold_bn(params["bn1_gamma"], params["bn1_beta"],
                     params["bn1_mean"], params["bn1_var"])
    s2, b2 = fold_bn(params["bn2_gamma"], params["bn2_beta"],
                     params["bn2_mean"], params["bn2_var"])
    out = jnp.maximum(conv(x, params["w1"]) * s1 + b1, 0.0)
    out = conv(out, params["w2"]) * s2 + b2 + x
    return jnp.maximum(out, 0.0)


def make_params(key, inplanes, planes):
    ks = jax.random.split(key, 6)
    return {
        # conv3x3 weights, HWIO layout, no bias (matches conv3x3(bias=False))
        "w1": jax.random.normal(ks[0], (3, 3, inplanes, planes),
                                jnp.float32) * 0.1,
        "w2": jax.random.normal(ks[1], (3, 3, planes, planes),
                                jnp.float32) * 0.1,
        # BatchNorm2d affine params + deterministic running stats
        "bn1_gamma": 1.0 + 0.05 * jax.random.normal(ks[2], (planes,), jnp.float32),
        "bn1_beta": 0.05 * jax.random.normal(ks[3], (planes,), jnp.float32),
        "bn1_mean": jnp.zeros((planes,), jnp.float32),
        "bn1_var": jnp.ones((planes,), jnp.float32),
        "bn2_gamma": 1.0 + 0.05 * jax.random.normal(ks[4], (planes,), jnp.float32),
        "bn2_beta": 0.05 * jax.random.normal(ks[5], (planes,), jnp.float32),
        "bn2_mean": jnp.zeros((planes,), jnp.float32),
        "bn2_var": jnp.ones((planes,), jnp.float32),
    }


if __name__ == "__main__":
    key = jax.random.PRNGKey(0)
    k_x, k_p = jax.random.split(key)

    N, H, W = 2, 16, 16
    inplanes = planes = 8      # stride=1, no downsample -> identity skip
                               # (W*C = 128 -> fully lane-dense blocks)

    # NHWC input (PyTorch NCHW equivalent would be (2, 8, 16, 16))
    x = jax.random.normal(k_x, (N, H, W, inplanes), jnp.float32)
    params = make_params(k_p, inplanes, planes)

    out = jax.block_until_ready(basic_block_forward(x, params))
    ref = jax.block_until_ready(_reference_forward(x, params))

    assert out.shape == (N, H, W, planes)
    # bf16 MXU inputs (f32 accumulation, f32 BN epilogue) vs f32 reference.
    err = jnp.max(jnp.abs(out - ref))
    assert jnp.allclose(out, ref, rtol=5e-2, atol=5e-2), f"max abs err {err}"

    print("KERNEL_OK")
</pallas_src>

<mosaic_0001>
module attributes {stable_mosaic.version = 11 : i64} {
  func.func @_basic_block_kernel(%arg0: i32, %arg1: memref<1x16x128xf32, #tpu.memory_space<vmem>>, %arg2: memref<3x128x128xbf16, #tpu.memory_space<vmem>>, %arg3: memref<1x128xf32, #tpu.memory_space<vmem>>, %arg4: memref<1x128xf32, #tpu.memory_space<vmem>>, %arg5: memref<3x128x128xbf16, #tpu.memory_space<vmem>>, %arg6: memref<1x128xf32, #tpu.memory_space<vmem>>, %arg7: memref<1x128xf32, #tpu.memory_space<vmem>>, %arg8: memref<1x16x128xf32, #tpu.memory_space<vmem>>) attributes {dimension_semantics = [#tpu.dimension_semantics<parallel>], iteration_bounds = array<i64: 2>, scalar_prefetch = 0 : i64, scratch_operands = 0 : i64, tpu.core_type = #tpu.core_type<tc>, window_params = [{transform_indices = @transform_0, window_bounds = array<i64: 1, 16, 128>}, {pipeline_mode = #tpu.pipeline_mode<synchronous>, transform_indices = @transform_1, window_bounds = array<i64: 3, 128, 128>}, {pipeline_mode = #tpu.pipeline_mode<synchronous>, transform_indices = @transform_2, window_bounds = array<i64: 1, 128>}, {pipeline_mode = #tpu.pipeline_mode<synchronous>, transform_indices = @transform_3, window_bounds = array<i64: 1, 128>}, {pipeline_mode = #tpu.pipeline_mode<synchronous>, transform_indices = @transform_4, window_bounds = array<i64: 3, 128, 128>}, {pipeline_mode = #tpu.pipeline_mode<synchronous>, transform_indices = @transform_5, window_bounds = array<i64: 1, 128>}, {pipeline_mode = #tpu.pipeline_mode<synchronous>, transform_indices = @transform_6, window_bounds = array<i64: 1, 128>}, {transform_indices = @transform_7, window_bounds = array<i64: 1, 16, 128>}]} {
    %c0 = arith.constant 0 : index
    %c0_0 = arith.constant 0 : index
    %c0_1 = arith.constant 0 : index
    %0 = vector.load %arg1[%c0, %c0_0, %c0_1] : memref<1x16x128xf32, #tpu.memory_space<vmem>>, vector<1x16x128xf32>
    %1 = vector.shape_cast %0 : vector<1x16x128xf32> to vector<16x128xf32>
    %2 = arith.truncf %1 : vector<16x128xf32> to vector<16x128xbf16>
    %3 = tpu.iota {dimensions = array<i32: 0>} : vector<16x128xi32>
    %c16_i32 = arith.constant 16 : i32
    %c0_i32 = arith.constant 0 : i32
    %4 = arith.cmpi eq, %c16_i32, %c0_i32 : i32
    %c1_i32 = arith.constant 1 : i32
    %5 = arith.select %4, %c1_i32, %c16_i32 : i32
    %6 = vector.broadcast %5 : i32 to vector<16x128xi32>
    %7 = arith.remsi %3, %6 : vector<16x128xi32>
    %c0_i32_2 = arith.constant 0 : i32
    %8 = vector.broadcast %c0_i32_2 : i32 to vector<16x128xi32>
    %9 = arith.cmpi ne, %7, %8 : vector<16x128xi32>
    %c0_i32_3 = arith.constant 0 : i32
    %10 = vector.broadcast %c0_i32_3 : i32 to vector<16x128xi32>
    %11 = arith.cmpi slt, %7, %10 : vector<16x128xi32>
    %c0_i32_4 = arith.constant 0 : i32
    %12 = arith.cmpi slt, %5, %c0_i32_4 : i32
    %13 = vector.broadcast %12 : i1 to vector<16x128xi1>
    %14 = vector.broadcast %13 : vector<16x128xi1> to vector<16x128xi1>
    %15 = arith.xori %11, %14 : vector<16x128xi1>
    %16 = arith.andi %15, %9 : vector<16x128xi1>
    %17 = vector.broadcast %5 : i32 to vector<16x128xi32>
    %18 = arith.addi %7, %17 : vector<16x128xi32>
    %19 = arith.select %16, %18, %7 : vector<16x128xi1>, vector<16x128xi32>
    %c0_i32_5 = arith.constant 0 : i32
    %20 = vector.broadcast %c0_i32_5 : i32 to vector<16x128xi32>
    %21 = arith.cmpi ne, %19, %20 : vector<16x128xi32>
    %c16_i32_6 = arith.constant 16 : i32
    %c0_i32_7 = arith.constant 0 : i32
    %22 = arith.cmpi eq, %c16_i32_6, %c0_i32_7 : i32
    %c1_i32_8 = arith.constant 1 : i32
    %23 = arith.select %22, %c1_i32_8, %c16_i32_6 : i32
    %24 = vector.broadcast %23 : i32 to vector<16x128xi32>
    %25 = arith.remsi %3, %24 : vector<16x128xi32>
    %c0_i32_9 = arith.constant 0 : i32
    %26 = vector.broadcast %c0_i32_9 : i32 to vector<16x128xi32>
    %27 = arith.cmpi ne, %25, %26 : vector<16x128xi32>
    %c0_i32_10 = arith.constant 0 : i32
    %28 = vector.broadcast %c0_i32_10 : i32 to vector<16x128xi32>
    %29 = arith.cmpi slt, %25, %28 : vector<16x128xi32>
    %c0_i32_11 = arith.constant 0 : i32
    %30 = arith.cmpi slt, %23, %c0_i32_11 : i32
    %31 = vector.broadcast %30 : i1 to vector<16x128xi1>
    %32 = vector.broadcast %31 : vector<16x128xi1> to vector<16x128xi1>
    %33 = arith.xori %29, %32 : vector<16x128xi1>
    %34 = arith.andi %33, %27 : vector<16x128xi1>
    %35 = vector.broadcast %23 : i32 to vector<16x128xi32>
    %36 = arith.addi %25, %35 : vector<16x128xi32>
    %37 = arith.select %34, %36, %25 : vector<16x128xi1>, vector<16x128xi32>
    %c15_i32 = arith.constant 15 : i32
    %38 = vector.broadcast %c15_i32 : i32 to vector<16x128xi32>
    %39 = arith.cmpi ne, %37, %38 : vector<16x128xi32>
    %c1 = arith.constant 1 : index
    %c0_12 = arith.constant 0 : index
    %c0_13 = arith.constant 0 : index
    %40 = vector.load %arg2[%c1, %c0_12, %c0_13] : memref<3x128x128xbf16, #tpu.memory_space<vmem>>, vector<1x128x128xbf16>
    %41 = vector.shape_cast %40 : vector<1x128x128xbf16> to vector<128x128xbf16>
    %cst = arith.constant dense<0.000000e+00> : vector<16x128xf32>
    %42 = tpu.matmul %2, %41, %cst {dimension_numbers = #tpu.dot_dimension_numbers<[1], [0], [0], [1], [0, 0, 1, 1], [], []>} : vector<16x128xbf16>, vector<128x128xbf16>, vector<16x128xf32> -> vector<16x128xf32>
    %c0_14 = arith.constant 0 : index
    %c0_15 = arith.constant 0 : index
    %c0_16 = arith.constant 0 : index
    %43 = vector.load %arg2[%c0_14, %c0_15, %c0_16] : memref<3x128x128xbf16, #tpu.memory_space<vmem>>, vector<1x128x128xbf16>
    %44 = vector.shape_cast %43 : vector<1x128x128xbf16> to vector<128x128xbf16>
    %cst_17 = arith.constant dense<0.000000e+00> : vector<16x128xf32>
    %45 = tpu.matmul %2, %44, %cst_17 {dimension_numbers = #tpu.dot_dimension_numbers<[1], [0], [0], [1], [0, 0, 1, 1], [], []>} : vector<16x128xbf16>, vector<128x128xbf16>, vector<16x128xf32> -> vector<16x128xf32>
    %c2 = arith.constant 2 : index
    %c0_18 = arith.constant 0 : index
    %c0_19 = arith.constant 0 : index
    %46 = vector.load %arg2[%c2, %c0_18, %c0_19] : memref<3x128x128xbf16, #tpu.memory_space<vmem>>, vector<1x128x128xbf16>
    %47 = vector.shape_cast %46 : vector<1x128x128xbf16> to vector<128x128xbf16>
    %cst_20 = arith.constant dense<0.000000e+00> : vector<16x128xf32>
    %48 = tpu.matmul %2, %47, %cst_20 {dimension_numbers = #tpu.dot_dimension_numbers<[1], [0], [0], [1], [0, 0, 1, 1], [], []>} : vector<16x128xbf16>, vector<128x128xbf16>, vector<16x128xf32> -> vector<16x128xf32>
    %c1_i32_21 = arith.constant 1 : i32
    %49 = tpu.dynamic_rotate %45 by %c1_i32_21 dim 0 : vector<16x128xf32>, i32 -> vector<16x128xf32>
    %cst_22 = arith.constant 0.000000e+00 : f32
    %50 = vector.broadcast %cst_22 : f32 to vector<16x128xf32>
    %51 = arith.select %21, %49, %50 : vector<16x128xi1>, vector<16x128xf32>
    %52 = arith.addf %42, %51 : vector<16x128xf32>
    %c15_i32_23 = arith.constant 15 : i32
    %53 = tpu.dynamic_rotate %48 by %c15_i32_23 dim 0 : vector<16x128xf32>, i32 -> vector<16x128xf32>
    %cst_24 = arith.constant 0.000000e+00 : f32
    %54 = vector.broadcast %cst_24 : f32 to vector<16x128xf32>
    %55 = arith.select %39, %53, %54 : vector<16x128xi1>, vector<16x128xf32>
    %56 = arith.addf %52, %55 : vector<16x128xf32>
    %c0_25 = arith.constant 0 : index
    %c0_26 = arith.constant 0 : index
    %57 = vector.load %arg3[%c0_25, %c0_26] : memref<1x128xf32, #tpu.memory_space<vmem>>, vector<1x128xf32>
    %58 = vector.broadcast %57 : vector<1x128xf32> to vector<16x128xf32>
    %59 = arith.mulf %56, %58 : vector<16x128xf32>
    %c0_27 = arith.constant 0 : index
    %c0_28 = arith.constant 0 : index
    %60 = vector.load %arg4[%c0_27, %c0_28] : memref<1x128xf32, #tpu.memory_space<vmem>>, vector<1x128xf32>
    %61 = vector.broadcast %60 : vector<1x128xf32> to vector<16x128xf32>
    %62 = arith.addf %59, %61 : vector<16x128xf32>
    %cst_29 = arith.constant 0.000000e+00 : f32
    %63 = vector.broadcast %cst_29 : f32 to vector<16x128xf32>
    %64 = arith.maximumf %62, %63 : vector<16x128xf32>
    %65 = arith.truncf %64 : vector<16x128xf32> to vector<16x128xbf16>
    %c1_30 = arith.constant 1 : index
    %c0_31 = arith.constant 0 : index
    %c0_32 = arith.constant 0 : index
    %66 = vector.load %arg5[%c1_30, %c0_31, %c0_32] : memref<3x128x128xbf16, #tpu.memory_space<vmem>>, vector<1x128x128xbf16>
    %67 = vector.shape_cast %66 : vector<1x128x128xbf16> to vector<128x128xbf16>
    %cst_33 = arith.constant dense<0.000000e+00> : vector<16x128xf32>
    %68 = tpu.matmul %65, %67, %cst_33 {dimension_numbers = #tpu.dot_dimension_numbers<[1], [0], [0], [1], [0, 0, 1, 1], [], []>} : vector<16x128xbf16>, vector<128x128xbf16>, vector<16x128xf32> -> vector<16x128xf32>
    %c0_34 = arith.constant 0 : index
    %c0_35 = arith.constant 0 : index
    %c0_36 = arith.constant 0 : index
    %69 = vector.load %arg5[%c0_34, %c0_35, %c0_36] : memref<3x128x128xbf16, #tpu.memory_space<vmem>>, vector<1x128x128xbf16>
    %70 = vector.shape_cast %69 : vector<1x128x128xbf16> to vector<128x128xbf16>
    %cst_37 = arith.constant dense<0.000000e+00> : vector<16x128xf32>
    %71 = tpu.matmul %65, %70, %cst_37 {dimension_numbers = #tpu.dot_dimension_numbers<[1], [0], [0], [1], [0, 0, 1, 1], [], []>} : vector<16x128xbf16>, vector<128x128xbf16>, vector<16x128xf32> -> vector<16x128xf32>
    %c2_38 = arith.constant 2 : index
    %c0_39 = arith.constant 0 : index
    %c0_40 = arith.constant 0 : index
    %72 = vector.load %arg5[%c2_38, %c0_39, %c0_40] : memref<3x128x128xbf16, #tpu.memory_space<vmem>>, vector<1x128x128xbf16>
    %73 = vector.shape_cast %72 : vector<1x128x128xbf16> to vector<128x128xbf16>
    %cst_41 = arith.constant dense<0.000000e+00> : vector<16x128xf32>
    %74 = tpu.matmul %65, %73, %cst_41 {dimension_numbers = #tpu.dot_dimension_numbers<[1], [0], [0], [1], [0, 0, 1, 1], [], []>} : vector<16x128xbf16>, vector<128x128xbf16>, vector<16x128xf32> -> vector<16x128xf32>
    %c1_i32_42 = arith.constant 1 : i32
    %75 = tpu.dynamic_rotate %71 by %c1_i32_42 dim 0 : vector<16x128xf32>, i32 -> vector<16x128xf32>
    %cst_43 = arith.constant 0.000000e+00 : f32
    %76 = vector.broadcast %cst_43 : f32 to vector<16x128xf32>
    %77 = arith.select %21, %75, %76 : vector<16x128xi1>, vector<16x128xf32>
    %78 = arith.addf %68, %77 : vector<16x128xf32>
    %c15_i32_44 = arith.constant 15 : i32
    %79 = tpu.dynamic_rotate %74 by %c15_i32_44 dim 0 : vector<16x128xf32>, i32 -> vector<16x128xf32>
    %cst_45 = arith.constant 0.000000e+00 : f32
    %80 = vector.broadcast %cst_45 : f32 to vector<16x128xf32>
    %81 = arith.select %39, %79, %80 : vector<16x128xi1>, vector<16x128xf32>
    %82 = arith.addf %78, %81 : vector<16x128xf32>
    %c0_46 = arith.constant 0 : index
    %c0_47 = arith.constant 0 : index
    %83 = vector.load %arg6[%c0_46, %c0_47] : memref<1x128xf32, #tpu.memory_space<vmem>>, vector<1x128xf32>
    %84 = vector.broadcast %83 : vector<1x128xf32> to vector<16x128xf32>
    %85 = arith.mulf %82, %84 : vector<16x128xf32>
    %c0_48 = arith.constant 0 : index
    %c0_49 = arith.constant 0 : index
    %86 = vector.load %arg7[%c0_48, %c0_49] : memref<1x128xf32, #tpu.memory_space<vmem>>, vector<1x128xf32>
    %87 = vector.broadcast %86 : vector<1x128xf32> to vector<16x128xf32>
    %88 = arith.addf %85, %87 : vector<16x128xf32>
    %c0_50 = arith.constant 0 : index
    %c0_51 = arith.constant 0 : index
    %c0_52 = arith.constant 0 : index
    %89 = vector.load %arg1[%c0_50, %c0_51, %c0_52] : memref<1x16x128xf32, #tpu.memory_space<vmem>>, vector<1x16x128xf32>
    %90 = vector.shape_cast %89 : vector<1x16x128xf32> to vector<16x128xf32>
    %91 = arith.addf %88, %90 : vector<16x128xf32>
    %cst_53 = arith.constant 0.000000e+00 : f32
    %92 = vector.broadcast %cst_53 : f32 to vector<16x128xf32>
    %93 = arith.maximumf %91, %92 : vector<16x128xf32>
    %94 = vector.shape_cast %93 : vector<16x128xf32> to vector<1x16x128xf32>
    %c0_54 = arith.constant 0 : index
    %c0_55 = arith.constant 0 : index
    %c0_56 = arith.constant 0 : index
    %95 = vector.load %arg8[%c0_54, %c0_55, %c0_56] : memref<1x16x128xf32, #tpu.memory_space<vmem>>, vector<1x16x128xf32>
    tpu.vector_store %arg8[%c0_54, %c0_55, %c0_56], %94 {strides = array<i32>} : memref<1x16x128xf32, #tpu.memory_space<vmem>>, vector<1x16x128xf32>,
    return
  }
  func.func @transform_0(%arg0: i32) -> (i32, i32, i32) {
    %c0_i32 = arith.constant 0 : i32
    %c0_i32_0 = arith.constant 0 : i32
    %c0_i32_1 = arith.constant 0 : i32
    return %arg0, %c0_i32, %c0_i32_0 : i32, i32, i32
  }
  func.func @transform_1(%arg0: i32) -> (i32, i32, i32) {
    %c0_i32 = arith.constant 0 : i32
    %c0_i32_0 = arith.constant 0 : i32
    %c0_i32_1 = arith.constant 0 : i32
    %c0_i32_2 = arith.constant 0 : i32
    return %c0_i32, %c0_i32_0, %c0_i32_1 : i32, i32, i32
  }
  func.func @transform_2(%arg0: i32) -> (i32, i32) {
    %c0_i32 = arith.constant 0 : i32
    %c0_i32_0 = arith.constant 0 : i32
    %c0_i32_1 = arith.constant 0 : i32
    return %c0_i32, %c0_i32_0 : i32, i32
  }
  func.func @transform_3(%arg0: i32) -> (i32, i32) {
    %c0_i32 = arith.constant 0 : i32
    %c0_i32_0 = arith.constant 0 : i32
    %c0_i32_1 = arith.constant 0 : i32
    return %c0_i32, %c0_i32_0 : i32, i32
  }
  func.func @transform_4(%arg0: i32) -> (i32, i32, i32) {
    %c0_i32 = arith.constant 0 : i32
    %c0_i32_0 = arith.constant 0 : i32
    %c0_i32_1 = arith.constant 0 : i32
    %c0_i32_2 = arith.constant 0 : i32
    return %c0_i32, %c0_i32_0, %c0_i32_1 : i32, i32, i32
  }
  func.func @transform_5(%arg0: i32) -> (i32, i32) {
    %c0_i32 = arith.constant 0 : i32
    %c0_i32_0 = arith.constant 0 : i32
    %c0_i32_1 = arith.constant 0 : i32
    return %c0_i32, %c0_i32_0 : i32, i32
  }
  func.func @transform_6(%arg0: i32) -> (i32, i32) {
    %c0_i32 = arith.constant 0 : i32
    %c0_i32_0 = arith.constant 0 : i32
    %c0_i32_1 = arith.constant 0 : i32
    return %c0_i32, %c0_i32_0 : i32, i32
  }
  func.func @transform_7(%arg0: i32) -> (i32, i32, i32) {
    %c0_i32 = arith.constant 0 : i32
    %c0_i32_0 = arith.constant 0 : i32
    %c0_i32_1 = arith.constant 0 : i32
    return %arg0, %c0_i32, %c0_i32_0 : i32, i32, i32
  }
}

</mosaic_0001>

<llo_original>
// kernel: tpu_custom_call.1
$region0: #{tpu_custom_call.1}
  #allocation0 [shape = 'u32[]', space=smem, size = 0x4, offset = 0x4, fixed_abs, tag = 'smem constant byte address 0x4 - core index']
  #allocation1 [shape = 'u32[144,128]{1,0:T(1,128)}', space=vmem, size = 0x12000, scoped, tag = 'internal scratch']
  %s0 = inlined_call_operand.hbm [shape: f32[2,16,128], index: 0, kind: input, shape index: {}]
  %s1 = inlined_call_operand.hbm [shape: bf16[3,128,128], index: 1, kind: input, shape index: {}]
  %s2 = inlined_call_operand.vmem [shape: f32[1,128], index: 2, kind: input, shape index: {}]
  %s3 = inlined_call_operand.vmem [shape: f32[1,128], index: 3, kind: input, shape index: {}]
  %s4 = inlined_call_operand.hbm [shape: bf16[3,128,128], index: 4, kind: input, shape index: {}]
  %s5 = inlined_call_operand.vmem [shape: f32[1,128], index: 5, kind: input, shape index: {}]
  %s6 = inlined_call_operand.vmem [shape: f32[1,128], index: 6, kind: input, shape index: {}]
  %s7 = inlined_call_operand.hbm [shape: f32[2,16,128], index: 7, kind: output, shape index: {}]
  %s8 = sld [smem:[#allocation0]]
  $region73: #{tpu_custom_call.1} parent=0
    _
  %s10 = ssub.s32 1, %s8
  %s11 = scalar_select 0, %s10, %s8
  $region1: #{tpu_custom_call.1} parent=0
    #allocation2 [shape = 'u8[16384]{0}', space=vmem, size = 0x4000, scoped, tag = 'input window, operand 0']
    #allocation3 [shape = 's32[2]{0}', space=sflag, size = 0x8, scoped, tag = 'scoped memory for tpu_custom_call.1']
    #allocation4 [shape = 's32[2]{0}', space=sflag, size = 0x8, scoped, tag = 'scoped memory for tpu_custom_call.1']
    #allocation5 [shape = 'u8[98304]{0}', space=vmem, size = 0x18000, scoped, tag = 'input window, operand 1, single buffered']
    #allocation6 [shape = 's32[1]{0}', space=sflag, size = 0x4, scoped, tag = 'scoped memory for tpu_custom_call.1']
    #allocation7 [shape = 'u8[98304]{0}', space=vmem, size = 0x18000, scoped, tag = 'input window, operand 4, single buffered']
    #allocation8 [shape = 'u8[16384]{0}', space=vmem, size = 0x4000, scoped, tag = 'output window, operand 0']
    %12 = vsyncpa [#allocation3], 0
    %s13 = scalar_lea.sflag [#allocation3], 1
    %14 = vsyncpa %s13, 0
    %15 = vsyncpa [#allocation6], 0
    %16 = vsyncpa [#allocation4], 0
    %s17 = scalar_lea.sflag [#allocation4], 1
    %18 = vsyncpa %s17, 0
    loop: start=0, step=1, limit=4
    $region2: #{tpu_custom_call.1} parent=1 // loop_pre_header
      _
    $region3: #{tpu_custom_call.1} parent=1 // loop_header
      %s20 = sphi 0, %s24
      %p21 = scmp.ge.s32.totalorder %s20, 4
      %s30 = sphi 0, %s32
      %s33 = sphi 0, %s30
      %s34 = sphi 0, %s33
      %s50 = sphi 0, %s34
      %s54 = sphi 0, %s54
      %s56 = sphi 0, %s54
      %s57 = sphi 0, %s56
      %s71 = sphi 0, %s57
      %s75 = sphi 0, %s75
      %s77 = sphi 0, %s75
      %s78 = sphi 0, %s77
      %s92 = sphi 0, %s78
      %s96 = sphi 0, %s96
      %s98 = sphi 0, %s96
      %s99 = sphi 0, %s98
      %s113 = sphi 0, %s99
      %s117 = sphi 0, %s117
      %s119 = sphi 0, %s117
      %s120 = sphi 0, %s119
      %s134 = sphi 0, %s120
      %s138 = sphi 0, %s138
      %s140 = sphi 0, %s138
      %s141 = sphi 0, %s140
      %s155 = sphi 0, %s141
      %s159 = sphi 0, %s159
      %s161 = sphi 0, %s159
      %s162 = sphi 0, %s161
      %s176 = sphi 0, %s162
      %s182 = sphi 0, %s184
      %s185 = sphi 0, %s182
      %s186 = sphi 0, %s185
      %s202 = sphi 0, %s186
    $region4: #{tpu_custom_call.1} parent=1 // loop_header_branch
      %23 = sbr.rel (%p21) target = $region8
    $region5: #{tpu_custom_call.1} parent=1 // loop_body
      %s25 = ssub.s32 %s20, 1
      %s26 = ssub.s32 %s20, 2
      %s27 = sadd.s32 %s20, 1
      %s28 = ssub.s32 %s20, %s27
      %p29 = scmp.eq.s32.totalorder %s28, 0
      %s31 = sadd.s32 %s30, 1
      %s32 = scalar_select %p29, %s30, %s31
      %p35 = pneg %p29
      %p36 = scmp.eq.s32.totalorder %s20, 1
      %p37 = por %p35, %p36
      %p38 = scmp.ne.s32.totalorder %s30, %s33
      %p39 = scmp.eq.s32.totalorder %s20, 0
      %p40 = por %p38, %p39
      %p41 = scmp.ne.s32.totalorder %s30, %s33
      %p42 = scmp.eq.s32.totalorder %s25, 1
      %p43 = por %p41, %p42
      %p44 = scmp.ne.s32.totalorder %s33, %s34
      %p45 = scmp.eq.s32.totalorder %s25, 0
      %p46 = por %p44, %p45
      %p47 = scmp.ne.s32.totalorder %s33, %s34
      %p48 = scmp.eq.s32.totalorder %s26, 1
      %p49 = por %p47, %p48
      %p51 = scmp.ne.s32.totalorder %s34, %s50
      %p52 = scmp.eq.s32.totalorder %s26, 0
      %p53 = por %p51, %p52
      %s55 = sadd.s32 %s54, 1
      %p58 = scmp.eq.s32.totalorder %s20, 1
      %p59 = scmp.ne.s32.totalorder %s54, %s56
      %p60 = scmp.eq.s32.totalorder %s20, 0
      %p61 = por %p59, %p60
      %p62 = scmp.ne.s32.totalorder %s54, %s56
      %p63 = scmp.eq.s32.totalorder %s25, 1
      %p64 = por %p62, %p63
      %p65 = scmp.ne.s32.totalorder %s56, %s57
      %p66 = scmp.eq.s32.totalorder %s25, 0
      %p67 = por %p65, %p66
      %p68 = scmp.ne.s32.totalorder %s56, %s57
      %p69 = scmp.eq.s32.totalorder %s26, 1
      %p70 = por %p68, %p69
      %p72 = scmp.ne.s32.totalorder %s57, %s71
      %p73 = scmp.eq.s32.totalorder %s26, 0
      %p74 = por %p72, %p73
      %s76 = sadd.s32 %s75, 1
      %p79 = scmp.eq.s32.totalorder %s20, 1
      %p80 = scmp.ne.s32.totalorder %s75, %s77
      %p81 = scmp.eq.s32.totalorder %s20, 0
      %p82 = por %p80, %p81
      %p83 = scmp.ne.s32.totalorder %s75, %s77
      %p84 = scmp.eq.s32.totalorder %s25, 1
      %p85 = por %p83, %p84
      %p86 = scmp.ne.s32.totalorder %s77, %s78
      %p87 = scmp.eq.s32.totalorder %s25, 0
      %p88 = por %p86, %p87
      %p89 = scmp.ne.s32.totalorder %s77, %s78
      %p90 = scmp.eq.s32.totalorder %s26, 1
      %p91 = por %p89, %p90
      %p93 = scmp.ne.s32.totalorder %s78, %s92
      %p94 = scmp.eq.s32.totalorder %s26, 0
      %p95 = por %p93, %p94
      %s97 = sadd.s32 %s96, 1
      %p100 = scmp.eq.s32.totalorder %s20, 1
      %p101 = scmp.ne.s32.totalorder %s96, %s98
      %p102 = scmp.eq.s32.totalorder %s20, 0
      %p103 = por %p101, %p102
      %p104 = scmp.ne.s32.totalorder %s96, %s98
      %p105 = scmp.eq.s32.totalorder %s25, 1
      %p106 = por %p104, %p105
      %p107 = scmp.ne.s32.totalorder %s98, %s99
      %p108 = scmp.eq.s32.totalorder %s25, 0
      %p109 = por %p107, %p108
      %p110 = scmp.ne.s32.totalorder %s98, %s99
      %p111 = scmp.eq.s32.totalorder %s26, 1
      %p112 = por %p110, %p111
      %p114 = scmp.ne.s32.totalorder %s99, %s113
      %p115 = scmp.eq.s32.totalorder %s26, 0
      %p116 = por %p114, %p115
      %s118 = sadd.s32 %s117, 1
      %p121 = scmp.eq.s32.totalorder %s20, 1
      %p122 = scmp.ne.s32.totalorder %s117, %s119
      %p123 = scmp.eq.s32.totalorder %s20, 0
      %p124 = por %p122, %p123
      %p125 = scmp.ne.s32.totalorder %s117, %s119
      %p126 = scmp.eq.s32.totalorder %s25, 1
      %p127 = por %p125, %p126
      %p128 = scmp.ne.s32.totalorder %s119, %s120
      %p129 = scmp.eq.s32.totalorder %s25, 0
      %p130 = por %p128, %p129
      %p131 = scmp.ne.s32.totalorder %s119, %s120
      %p132 = scmp.eq.s32.totalorder %s26, 1
      %p133 = por %p131, %p132
      %p135 = scmp.ne.s32.totalorder %s120, %s134
      %p136 = scmp.eq.s32.totalorder %s26, 0
      %p137 = por %p135, %p136
      %s139 = sadd.s32 %s138, 1
      %p142 = scmp.eq.s32.totalorder %s20, 1
      %p143 = scmp.ne.s32.totalorder %s138, %s140
      %p144 = scmp.eq.s32.totalorder %s20, 0
      %p145 = por %p143, %p144
      %p146 = scmp.ne.s32.totalorder %s138, %s140
      %p147 = scmp.eq.s32.totalorder %s25, 1
      %p148 = por %p146, %p147
      %p149 = scmp.ne.s32.totalorder %s140, %s141
      %p150 = scmp.eq.s32.totalorder %s25, 0
      %p151 = por %p149, %p150
      %p152 = scmp.ne.s32.totalorder %s140, %s141
      %p153 = scmp.eq.s32.totalorder %s26, 1
      %p154 = por %p152, %p153
      %p156 = scmp.ne.s32.totalorder %s141, %s155
      %p157 = scmp.eq.s32.totalorder %s26, 0
      %p158 = por %p156, %p157
      %s160 = sadd.s32 %s159, 1
      %p163 = scmp.eq.s32.totalorder %s20, 1
      %p164 = scmp.ne.s32.totalorder %s159, %s161
      %p165 = scmp.eq.s32.totalorder %s20, 0
      %p166 = por %p164, %p165
      %p167 = scmp.ne.s32.totalorder %s159, %s161
      %p168 = scmp.eq.s32.totalorder %s25, 1
      %p169 = por %p167, %p168
      %p170 = scmp.ne.s32.totalorder %s161, %s162
      %p171 = scmp.eq.s32.totalorder %s25, 0
      %p172 = por %p170, %p171
      %p173 = scmp.ne.s32.totalorder %s161, %s162
      %p174 = scmp.eq.s32.totalorder %s26, 1
      %p175 = por %p173, %p174
      %p177 = scmp.ne.s32.totalorder %s162, %s176
      %p178 = scmp.eq.s32.totalorder %s26, 0
      %p179 = por %p177, %p178
      %s180 = ssub.s32 %s20, %s27
      %p181 = scmp.eq.s32.totalorder %s180, 0
      %s183 = sadd.s32 %s182, 1
      %s184 = scalar_select %p181, %s182, %s183
      %p187 = pneg %p181
      %p188 = scmp.eq.s32.totalorder %s20, 1
      %p189 = por %p187, %p188
      %p190 = scmp.ne.s32.totalorder %s182, %s185
      %p191 = scmp.eq.s32.totalorder %s20, 0
      %p192 = por %p190, %p191
      %p193 = scmp.ne.s32.totalorder %s182, %s185
      %p194 = scmp.eq.s32.totalorder %s25, 1
      %p195 = por %p193, %p194
      %p196 = scmp.ne.s32.totalorder %s185, %s186
      %p197 = scmp.eq.s32.totalorder %s25, 0
      %p198 = por %p196, %p197
      %p199 = scmp.ne.s32.totalorder %s185, %s186
      %p200 = scmp.eq.s32.totalorder %s26, 1
      %p201 = por %p199, %p200
      %p203 = scmp.ne.s32.totalorder %s186, %s202
      %p204 = scmp.eq.s32.totalorder %s26, 0
      %p205 = por %p203, %p204
      %p206 = scmp.le.s32.totalorder 1, %s20
      %p207 = scmp.lt.s32.totalorder %s20, 3
      %p208 = pnand %p206, %p207
      %p209 = pneg %p208
      // Predicated region
      $region9: #{tpu_custom_call.1} parent=5 // pred_check
        _
      $region10: #{tpu_custom_call.1} parent=5 // pred_check_branch
        %211 = sbr.rel (%p208) target = $region12
      $region11: #{tpu_custom_call.1} parent=5 // pred_region
        %s212 = ssub.s32 %s20, 1
        // Predicated region
        $region13: #{tpu_custom_call.1} parent=11 // pred_check
          %p213 = pneg %p67
        $region14: #{tpu_custom_call.1} parent=11 // pred_check_branch
          %215 = sbr.rel (%p213) target = $region16
        $region15: #{tpu_custom_call.1} parent=11 // pred_region
          %s217 = ssub.s32 3072, 3072
          %218 = vsyncadd [#allocation6], %s217
          %s219 = sshll.u32 [#allocation5], 4
          %s220 = int_to_ptr.vmem [resolvable:$true] %s219
          %225 = dma.hbm_to_vmem [thread:$0]  %s1, 3072, %s220, [#allocation6], 64, 64, 4
        $region16: #{tpu_custom_call.1} parent=11 // pred_fallthru
          _
        // Predicated region
        $region17: #{tpu_custom_call.1} parent=11 // pred_check
          %p226 = pneg %p88
        $region18: #{tpu_custom_call.1} parent=11 // pred_check_branch
          %228 = sbr.rel (%p226) target = $region20
        $region19: #{tpu_custom_call.1} parent=11 // pred_region
          _
        $region20: #{tpu_custom_call.1} parent=11 // pred_fallthru
          _
        // Predicated region
        $region21: #{tpu_custom_call.1} parent=11 // pred_check
          %p229 = pneg %p109
        $region22: #{tpu_custom_call.1} parent=11 // pred_check_branch
          %231 = sbr.rel (%p229) target = $region24
        $region23: #{tpu_custom_call.1} parent=11 // pred_region
          _
        $region24: #{tpu_custom_call.1} parent=11 // pred_fallthru
          _
        // Predicated region
        $region25: #{tpu_custom_call.1} parent=11 // pred_check
          %p232 = pneg %p130
        $region26: #{tpu_custom_call.1} parent=11 // pred_check_branch
          %234 = sbr.rel (%p232) target = $region28
        $region27: #{tpu_custom_call.1} parent=11 // pred_region
          %s236 = ssub.s32 3072, 3072
          %237 = vsyncadd [#allocation6], %s236
          %s238 = sshll.u32 [#allocation7], 4
          %s239 = int_to_ptr.vmem [resolvable:$true] %s238
          %244 = dma.hbm_to_vmem [thread:$0]  %s4, 3072, %s239, [#allocation6], 64, 64, 4
        $region28: #{tpu_custom_call.1} parent=11 // pred_fallthru
          _
        // Predicated region
        $region29: #{tpu_custom_call.1} parent=11 // pred_check
          %p245 = pneg %p151
        $region30: #{tpu_custom_call.1} parent=11 // pred_check_branch
          %247 = sbr.rel (%p245) target = $region32
        $region31: #{tpu_custom_call.1} parent=11 // pred_region
          _
        $region32: #{tpu_custom_call.1} parent=11 // pred_fallthru
          _
        // Predicated region
        $region33: #{tpu_custom_call.1} parent=11 // pred_check
          %p248 = pneg %p172
        $region34: #{tpu_custom_call.1} parent=11 // pred_check_branch
          %250 = sbr.rel (%p248) target = $region36
        $region35: #{tpu_custom_call.1} parent=11 // pred_region
          _
        $region36: #{tpu_custom_call.1} parent=11 // pred_fallthru
          _
      $region12: #{tpu_custom_call.1} parent=5 // pred_fallthru
        _
      %p251 = scmp.lt.s32.totalorder %s20, 2
      // Predicated region
      $region37: #{tpu_custom_call.1} parent=5 // pred_check
        %p252 = pneg %p251
      $region38: #{tpu_custom_call.1} parent=5 // pred_check_branch
        %254 = sbr.rel (%p252) target = $region40
      $region39: #{tpu_custom_call.1} parent=5 // pred_region
        // Predicated region
        $region41: #{tpu_custom_call.1} parent=39 // pred_check
          %p255 = pneg %p40
        $region42: #{tpu_custom_call.1} parent=39 // pred_check_branch
          %257 = sbr.rel (%p255) target = $region44
        $region43: #{tpu_custom_call.1} parent=39 // pred_region
          %s258 = sand.u32 %s30, 1
          %s259 = scalar_lea.sflag [#allocation3], %s258
          %s260 = sand.u32 %s30, 1
          %s261 = smul.addr %s260, 16
          %s262 = scalar_lea.vmem [#allocation2], %s261
          %s264 = ssub.s32 256, 256
          %265 = vsyncadd %s259, %s264
          %s266 = smul.addr %s20, 2
          %s267 = smul.addr %s266, 128
          %s268 = scalar_lea.hbm %s0, %s267
          %s269 = sshll.u32 %s262, 4
          %s270 = int_to_ptr.vmem [resolvable:$true] %s269
          %275 = dma.hbm_to_vmem [thread:$0]  %s268, 256, %s270, %s259, 128, 128, 8
        $region44: #{tpu_custom_call.1} parent=39 // pred_fallthru
          _
      $region40: #{tpu_custom_call.1} parent=5 // pred_fallthru
        _
      %p276 = scmp.le.s32.totalorder 1, %s20
      %p277 = scmp.lt.s32.totalorder %s20, 3
      %p278 = pnand %p276, %p277
      %p279 = pneg %p278
      // Predicated region
      $region45: #{tpu_custom_call.1} parent=5 // pred_check
        _
      $region46: #{tpu_custom_call.1} parent=5 // pred_check_branch
        %281 = sbr.rel (%p278) target = $region48
      $region47: #{tpu_custom_call.1} parent=5 // pred_region
        %s282 = ssub.s32 %s20, 1
        %s283 = sand.u32 %s33, 1
        %s284 = scalar_lea.sflag [#allocation3], %s283
        %s285 = sand.u32 %s33, 1
        %s286 = smul.addr %s285, 16
        %s287 = scalar_lea.vmem [#allocation2], %s286
        // Predicated region
        $region49: #{tpu_custom_call.1} parent=47 // pred_check
          %p288 = pneg %p46
        $region50: #{tpu_custom_call.1} parent=47 // pred_check_branch
          %290 = sbr.rel (%p288) target = $region52
        $region51: #{tpu_custom_call.1} parent=47 // pred_region
          %291 = dma.done %s284, 256
        $region52: #{tpu_custom_call.1} parent=47 // pred_fallthru
          _
        // Predicated region
        $region53: #{tpu_custom_call.1} parent=47 // pred_check
          %p292 = pneg %p67
        $region54: #{tpu_custom_call.1} parent=47 // pred_check_branch
          %294 = sbr.rel (%p292) target = $region56
        $region55: #{tpu_custom_call.1} parent=47 // pred_region
          %295 = dma.done [#allocation6], 3072
        $region56: #{tpu_custom_call.1} parent=47 // pred_fallthru
          _
        // Predicated region
        $region57: #{tpu_custom_call.1} parent=47 // pred_check
          %p296 = pneg %p130
        $region58: #{tpu_custom_call.1} parent=47 // pred_check_branch
          %298 = sbr.rel (%p296) target = $region60
        $region59: #{tpu_custom_call.1} parent=47 // pred_region
          %299 = dma.done [#allocation6], 3072
        $region60: #{tpu_custom_call.1} parent=47 // pred_fallthru
          _
        %s300 = sand.u32 %s33, 1
        %s301 = scalar_lea.sflag [#allocation3], %s300
        %s302 = sand.u32 %s33, 1
        %s303 = smul.addr %s302, 16
        %s304 = scalar_lea.vmem [#allocation2], %s303
        %p305 = pneg %p46
        %p306 = pneg %p43
        %p307 = pneg %p67
        %p308 = pneg %p64
        %p309 = pneg %p88
        %p310 = pneg %p85
        %p311 = pneg %p109
        %p312 = pneg %p106
        %p313 = pneg %p130
        %p314 = pneg %p127
        %p315 = pneg %p151
        %p316 = pneg %p148
        %p317 = pneg %p172
        %p318 = pneg %p169
        %p319 = pneg %p198
        %p320 = pneg %p195
        %s321 = sand.u32 %s185, 1
        %s322 = scalar_lea.sflag [#allocation4], %s321
        %s323 = sand.u32 %s185, 1
        %s324 = smul.addr %s323, 16
        %s325 = scalar_lea.vmem [#allocation8], %s324
        %v327 = vld [vmem:[%s287] sm:$0xff]
        %v328 = vld [vmem:[%s287 + $0x8] sm:$0xff]
        %v329 = vpack.c.bf16 %v328, %v327
        %v330 = vlaneseq
        %v331 = vshrl.u32 %v330, 7
        %v332 = vadd.s32 %v331, 8
        %vm333 = vcmp.lt.s32.totalorder %v331, 0
        %v334 = vsub.s32 0, %v331
        %v335 = vsel %vm333, %v334, %v331
        %v336 = vshrl.u32 %v335, 4
        %v337 = vand.u32 %v335, 15
        %v338 = vsub.s32 0, %v337
        %v339 = vsel %vm333, %v338, %v337
        %vm340 = vcmp.lt.s32.totalorder %v332, 0
        %v341 = vsub.s32 0, %v332
        %v342 = vsel %vm340, %v341, %v332
        %v343 = vshrl.u32 %v342, 4
        %v344 = vand.u32 %v342, 15
        %v345 = vsub.s32 0, %v344
        %v346 = vsel %vm340, %v345, %v344
        %vm347 = vcmp.ne.s32.totalorder %v339, 0
        %vm348 = vcmp.ne.s32.totalorder %v346, 0
        %vm349 = vcmp.lt.s32.totalorder %v339, 0
        %vm350 = vcmp.lt.s32.totalorder %v346, 0
        %vm351 = vmand %vm349, %vm347
        %vm352 = vmand %vm350, %vm348
        %v353 = vadd.s32 %v339, 16
        %v354 = vadd.s32 %v346, 16
        %v355 = vsel %vm351, %v353, %v339
        %v356 = vsel %vm352, %v354, %v346
        %vm357 = vcmp.ne.s32.totalorder %v355, 0
        %vm358 = vcmp.ne.s32.totalorder %v356, 0
        %vm359 = vcmp.ne.s32.totalorder %v355, 15
        %vm360 = vcmp.ne.s32.totalorder %v356, 15
        %s361 = scalar_lea.vmem [#allocation5], 64
        %v362 = vld [vmem:[%s361] sm:$0xf]
        %v363 = vld [vmem:[%s361 + $0x4] sm:$0xf]
        %v364 = vld [vmem:[%s361 + $0x8] sm:$0xf]
        %v365 = vld [vmem:[%s361 + $0xc] sm:$0xf]
        %v366 = vld [vmem:[%s361 + $0x10] sm:$0xf]
        %v367 = vld [vmem:[%s361 + $0x14] sm:$0xf]
        %v368 = vld [vmem:[%s361 + $0x18] sm:$0xf]
        %v369 = vld [vmem:[%s361 + $0x1c] sm:$0xf]
        %v370 = vld [vmem:[%s361 + $0x20] sm:$0xf]
        %v371 = vld [vmem:[%s361 + $0x24] sm:$0xf]
        %v372 = vld [vmem:[%s361 + $0x28] sm:$0xf]
        %v373 = vld [vmem:[%s361 + $0x2c] sm:$0xf]
        %v374 = vld [vmem:[%s361 + $0x30] sm:$0xf]
        %v375 = vld [vmem:[%s361 + $0x34] sm:$0xf]
        %v376 = vld [vmem:[%s361 + $0x38] sm:$0xf]
        %v377 = vld [vmem:[%s361 + $0x3c] sm:$0xf]
        %v378 = vld [vmem:[#allocation5] sm:$0xf]
        %v379 = vld [vmem:[#allocation5 + $0x4] sm:$0xf]
        %v380 = vld [vmem:[#allocation5 + $0x8] sm:$0xf]
        %v381 = vld [vmem:[#allocation5 + $0xc] sm:$0xf]
        %v382 = vld [vmem:[#allocation5 + $0x10] sm:$0xf]
        %v383 = vld [vmem:[#allocation5 + $0x14] sm:$0xf]
        %v384 = vld [vmem:[#allocation5 + $0x18] sm:$0xf]
        %v385 = vld [vmem:[#allocation5 + $0x1c] sm:$0xf]
        %v386 = vld [vmem:[#allocation5 + $0x20] sm:$0xf]
        %v387 = vld [vmem:[#allocation5 + $0x24] sm:$0xf]
        %v388 = vld [vmem:[#allocation5 + $0x28] sm:$0xf]
        %v389 = vld [vmem:[#allocation5 + $0x2c] sm:$0xf]
        %v390 = vld [vmem:[#allocation5 + $0x30] sm:$0xf]
        %v391 = vld [vmem:[#allocation5 + $0x34] sm:$0xf]
        %v392 = vld [vmem:[#allocation5 + $0x38] sm:$0xf]
        %v393 = vld [vmem:[#allocation5 + $0x3c] sm:$0xf]
        %v410 = vunpack.c.l.b16 %v378
        %v411 = vunpack.c.l.b16 %v379
        %v412 = vunpack.c.l.b16 %v380
        %v413 = vunpack.c.l.b16 %v381
        %v414 = vunpack.c.l.b16 %v382
        %v415 = vunpack.c.l.b16 %v383
        %v416 = vunpack.c.l.b16 %v384
        %v417 = vunpack.c.l.b16 %v385
        %v418 = vunpack.c.l.b16 %v386
        %v419 = vunpack.c.l.b16 %v387
        %v420 = vunpack.c.l.b16 %v388
        %v421 = vunpack.c.l.b16 %v389
        %v422 = vunpack.c.l.b16 %v390
        %v423 = vunpack.c.l.b16 %v391
        %v424 = vunpack.c.l.b16 %v392
        %v425 = vunpack.c.l.b16 %v393
        %v426 = vpack.c.b16 %v411, %v410
        %v427 = vpack.c.b16 %v413, %v412
        %v428 = vpack.c.b16 %v415, %v414
        %v429 = vpack.c.b16 %v417, %v416
        %v430 = vpack.c.b16 %v419, %v418
        %v431 = vpack.c.b16 %v421, %v420
        %v432 = vpack.c.b16 %v423, %v422
        %v433 = vpack.c.b16 %v425, %v424
        %442 = vmatprep.subr.bf16.mxu0 0
        %443 = vmatpush1.bf16.msra.mxu0 %v426
        %444 = vmatprep.subr.bf16.mxu0 0
        %445 = vmatpush1.bf16.msra.mxu0 %v427
        %446 = vmatprep.subr.bf16.mxu0 0
        %447 = vmatpush1.bf16.msra.mxu0 %v428
        %448 = vmatprep.subr.bf16.mxu0 0
        %449 = vmatpush1.bf16.msra.mxu0 %v429
        %450 = vmatprep.subr.bf16.mxu0 0
        %451 = vmatpush1.bf16.msra.mxu0 %v430
        %452 = vmatprep.subr.bf16.mxu0 0
        %453 = vmatpush1.bf16.msra.mxu0 %v431
        %454 = vmatprep.subr.bf16.mxu0 0
        %455 = vmatpush1.bf16.msra.mxu0 %v432
        %456 = vmatprep.subr.bf16.mxu0 0
        %457 = vmatpush1.bf16.msra.mxu0 %v433
        %458 = vmatprep.subr.bf16.mxu0 0
        %459 = vmatpush1.bf16.msra.mxu0 0
        %460 = vmatprep.subr.bf16.mxu0 0
        %461 = vmatpush1.bf16.msra.mxu0 0
        %462 = vmatprep.subr.bf16.mxu0 0
        %463 = vmatpush1.bf16.msra.mxu0 0
        %464 = vmatprep.subr.bf16.mxu0 0
        %465 = vmatpush1.bf16.msra.mxu0 0
        %466 = vmatprep.subr.bf16.mxu0 0
        %467 = vmatpush1.bf16.msra.mxu0 0
        %468 = vmatprep.subr.bf16.mxu0 0
        %469 = vmatpush1.bf16.msra.mxu0 0
        %470 = vmatprep.subr.bf16.mxu0 0
        %471 = vmatpush1.bf16.msra.mxu0 0
        %472 = vmatprep.subr.bf16.mxu0 0
        %473 = vmatpush1.bf16.msra.mxu0 0
        %474 = vmatprep.mubr.bf16.mxu0 0
        %475 = vmatmul.mubr.bf16.gmra.mrb[0].mxu0 %v329
        %v476 = vpop.f32.mrb[0].mxu0
        %v477 = vadd.f32 0.0, %v476
        %v478 = vpop.f32.mrb[0].mxu0
        %v479 = vpop.f32.mrb[0].mxu0
        %v480 = vadd.f32 0.0, %v479
        %v481 = vpop.f32.mrb[0].mxu0
        %482 = vdwg.mxu0
        %s483 = scalar_lea.vmem [#allocation5], 128
        %v484 = vld [vmem:[%s483] sm:$0xf]
        %v485 = vld [vmem:[%s483 + $0x4] sm:$0xf]
        %v486 = vld [vmem:[%s483 + $0x8] sm:$0xf]
        %v487 = vld [vmem:[%s483 + $0xc] sm:$0xf]
        %v488 = vld [vmem:[%s483 + $0x10] sm:$0xf]
        %v489 = vld [vmem:[%s483 + $0x14] sm:$0xf]
        %v490 = vld [vmem:[%s483 + $0x18] sm:$0xf]
        %v491 = vld [vmem:[%s483 + $0x1c] sm:$0xf]
        %v492 = vld [vmem:[%s483 + $0x20] sm:$0xf]
        %v493 = vld [vmem:[%s483 + $0x24] sm:$0xf]
        %v494 = vld [vmem:[%s483 + $0x28] sm:$0xf]
        %v495 = vld [vmem:[%s483 + $0x2c] sm:$0xf]
        %v496 = vld [vmem:[%s483 + $0x30] sm:$0xf]
        %v497 = vld [vmem:[%s483 + $0x34] sm:$0xf]
        %v498 = vld [vmem:[%s483 + $0x38] sm:$0xf]
        %v499 = vld [vmem:[%s483 + $0x3c] sm:$0xf]
        %v516 = vunpack.c.l.b16 %v484
        %v517 = vunpack.c.l.b16 %v485
        %v518 = vunpack.c.l.b16 %v486
        %v519 = vunpack.c.l.b16 %v487
        %v520 = vunpack.c.l.b16 %v488
        %v521 = vunpack.c.l.b16 %v489
        %v522 = vunpack.c.l.b16 %v490
        %v523 = vunpack.c.l.b16 %v491
        %v524 = vunpack.c.l.b16 %v492
        %v525 = vunpack.c.l.b16 %v493
        %v526 = vunpack.c.l.b16 %v494
        %v527 = vunpack.c.l.b16 %v495
        %v528 = vunpack.c.l.b16 %v496
        %v529 = vunpack.c.l.b16 %v497
        %v530 = vunpack.c.l.b16 %v498
        %v531 = vunpack.c.l.b16 %v499
        %v532 = vpack.c.b16 %v517, %v516
        %v533 = vpack.c.b16 %v519, %v518
        %v534 = vpack.c.b16 %v521, %v520
        %v535 = vpack.c.b16 %v523, %v522
        %v536 = vpack.c.b16 %v525, %v524
        %v537 = vpack.c.b16 %v527, %v526
        %v538 = vpack.c.b16 %v529, %v528
        %v539 = vpack.c.b16 %v531, %v530
        %548 = vmatprep.subr.bf16.mxu0 0
        %549 = vmatpush1.bf16.msra.mxu0 %v532
        %550 = vmatprep.subr.bf16.mxu0 0
        %551 = vmatpush1.bf16.msra.mxu0 %v533
        %552 = vmatprep.subr.bf16.mxu0 0
        %553 = vmatpush1.bf16.msra.mxu0 %v534
        %554 = vmatprep.subr.bf16.mxu0 0
        %555 = vmatpush1.bf16.msra.mxu0 %v535
        %556 = vmatprep.subr.bf16.mxu0 0
        %557 = vmatpush1.bf16.msra.mxu0 %v536
        %558 = vmatprep.subr.bf16.mxu0 0
        %559 = vmatpush1.bf16.msra.mxu0 %v537
        %560 = vmatprep.subr.bf16.mxu0 0
        %561 = vmatpush1.bf16.msra.mxu0 %v538
        %562 = vmatprep.subr.bf16.mxu0 0
        %563 = vmatpush1.bf16.msra.mxu0 %v539
        %564 = vmatprep.subr.bf16.mxu0 0
        %565 = vmatpush1.bf16.msra.mxu0 0
        %566 = vmatprep.subr.bf16.mxu0 0
        %567 = vmatpush1.bf16.msra.mxu0 0
        %568 = vmatprep.subr.bf16.mxu0 0
        %569 = vmatpush1.bf16.msra.mxu0 0
        %570 = vmatprep.subr.bf16.mxu0 0
        %571 = vmatpush1.bf16.msra.mxu0 0
        %572 = vmatprep.subr.bf16.mxu0 0
        %573 = vmatpush1.bf16.msra.mxu0 0
        %574 = vmatprep.subr.bf16.mxu0 0
        %575 = vmatpush1.bf16.msra.mxu0 0
        %576 = vmatprep.subr.bf16.mxu0 0
        %577 = vmatpush1.bf16.msra.mxu0 0
        %578 = vmatprep.subr.bf16.mxu0 0
        %579 = vmatpush1.bf16.msra.mxu0 0
        %580 = vmatprep.mubr.bf16.mxu0 0
        %581 = vmatmul.mubr.bf16.gmra.mrb[0].mxu0 %v329
        %v582 = vpop.f32.mrb[0].mxu0
        %v583 = vadd.f32 0.0, %v582
        %v584 = vpop.f32.mrb[0].mxu0
        %v585 = vpop.f32.mrb[0].mxu0
        %v586 = vadd.f32 0.0, %v585
        %v587 = vpop.f32.mrb[0].mxu0
        %588 = vdwg.mxu0
        %v589 = vrot.slane %v477, 7
        %v590 = vrot.slane %v480, 7
        %vm591 = vcmp.lt.s32.totalorder %v331, 1
        %v592 = vsel %vm591, %v589, %v590
        %v593 = vsel %vm591, %v590, %v589
        %v594 = vsel %vm357, %v593, 0.0
        %v595 = vsel %vm358, %v592, 0.0
        %v612 = vunpack.c.l.b16 %v362
        %v613 = vunpack.c.l.b16 %v363
        %v614 = vunpack.c.l.b16 %v364
        %v615 = vunpack.c.l.b16 %v365
        %v616 = vunpack.c.l.b16 %v366
        %v617 = vunpack.c.l.b16 %v367
        %v618 = vunpack.c.l.b16 %v368
        %v619 = vunpack.c.l.b16 %v369
        %v620 = vunpack.c.l.b16 %v370
        %v621 = vunpack.c.l.b16 %v371
        %v622 = vunpack.c.l.b16 %v372
        %v623 = vunpack.c.l.b16 %v373
        %v624 = vunpack.c.l.b16 %v374
        %v625 = vunpack.c.l.b16 %v375
        %v626 = vunpack.c.l.b16 %v376
        %v627 = vunpack.c.l.b16 %v377
        %v628 = vpack.c.b16 %v613, %v612
        %v629 = vpack.c.b16 %v615, %v614
        %v630 = vpack.c.b16 %v617, %v616
        %v631 = vpack.c.b16 %v619, %v618
        %v632 = vpack.c.b16 %v621, %v620
        %v633 = vpack.c.b16 %v623, %v622
        %v634 = vpack.c.b16 %v625, %v624
        %v635 = vpack.c.b16 %v627, %v626
        %644 = vmatprep.subr.bf16.mxu0 0
        %645 = vmatpush1.bf16.msra.mxu0 %v628
        %646 = vmatprep.subr.bf16.mxu0 0
        %647 = vmatpush1.bf16.msra.mxu0 %v629
        %648 = vmatprep.subr.bf16.mxu0 0
        %649 = vmatpush1.bf16.msra.mxu0 %v630
        %650 = vmatprep.subr.bf16.mxu0 0
        %651 = vmatpush1.bf16.msra.mxu0 %v631
        %652 = vmatprep.subr.bf16.mxu0 0
        %653 = vmatpush1.bf16.msra.mxu0 %v632
        %654 = vmatprep.subr.bf16.mxu0 0
        %655 = vmatpush1.bf16.msra.mxu0 %v633
        %656 = vmatprep.subr.bf16.mxu0 0
        %657 = vmatpush1.bf16.msra.mxu0 %v634
        %658 = vmatprep.subr.bf16.mxu0 0
        %659 = vmatpush1.bf16.msra.mxu0 %v635
        %660 = vmatprep.subr.bf16.mxu0 0
        %661 = vmatpush1.bf16.msra.mxu0 0
        %662 = vmatprep.subr.bf16.mxu0 0
        %663 = vmatpush1.bf16.msra.mxu0 0
        %664 = vmatprep.subr.bf16.mxu0 0
        %665 = vmatpush1.bf16.msra.mxu0 0
        %666 = vmatprep.subr.bf16.mxu0 0
        %667 = vmatpush1.bf16.msra.mxu0 0
        %668 = vmatprep.subr.bf16.mxu0 0
        %669 = vmatpush1.bf16.msra.mxu0 0
        %670 = vmatprep.subr.bf16.mxu0 0
        %671 = vmatpush1.bf16.msra.mxu0 0
        %672 = vmatprep.subr.bf16.mxu0 0
        %673 = vmatpush1.bf16.msra.mxu0 0
        %674 = vmatprep.subr.bf16.mxu0 0
        %675 = vmatpush1.bf16.msra.mxu0 0
        %676 = vmatprep.mubr.bf16.mxu0 0
        %677 = vmatmul.mubr.bf16.gmra.mrb[0].mxu0 %v329
        %v678 = vpop.f32.mrb[0].mxu0
        %v679 = vadd.f32 %v594, %v678
        %v680 = vpop.f32.mrb[0].mxu0
        %v681 = vpop.f32.mrb[0].mxu0
        %v682 = vadd.f32 %v595, %v681
        %v683 = vpop.f32.mrb[0].mxu0
        %684 = vdwg.mxu0
        %v685 = vrot.slane %v583, 1
        %v686 = vrot.slane %v586, 1
        %vm687 = vcmp.lt.s32.totalorder %v331, 7
        %v688 = vsel %vm687, %v685, %v686
        %v689 = vsel %vm687, %v686, %v685
        %v690 = vsel %vm359, %v688, 0.0
        %v691 = vsel %vm360, %v689, 0.0
        %v692 = vadd.f32 %v679, %v690
        %v693 = vadd.f32 %v682, %v691
        %v694 = vld [vmem:[%s2] sm:$0x1]
        %v696 = vlaneseq
        %v697 = vshrl.u32 %v696, 7
        %v698 = vsub.s32 0, %v697
        %v699 = vrot.slane %v694, %v698
        %v701 = vmul.f32 %v692, %v699
        %v702 = vmul.f32 %v693, %v699
        %v703 = vld [vmem:[%s3] sm:$0x1]
        %v705 = vlaneseq
        %v706 = vshrl.u32 %v705, 7
        %v707 = vsub.s32 0, %v706
        %v708 = vrot.slane %v703, %v707
        %v710 = vadd.f32 %v701, %v708
        %v711 = vadd.f32 %v702, %v708
        %v712 = vmax.f32 %v710, 0.0
        %v713 = vmax.f32 %v711, 0.0
        %v714 = vpack.c.bf16 %v713, %v712
        %s715 = scalar_lea.vmem [#allocation7], 64
        %v716 = vld [vmem:[%s715] sm:$0xf]
        %v717 = vld [vmem:[%s715 + $0x4] sm:$0xf]
        %v718 = vld [vmem:[%s715 + $0x8] sm:$0xf]
        %v719 = vld [vmem:[%s715 + $0xc] sm:$0xf]
        %v720 = vld [vmem:[%s715 + $0x10] sm:$0xf]
        %v721 = vld [vmem:[%s715 + $0x14] sm:$0xf]
        %v722 = vld [vmem:[%s715 + $0x18] sm:$0xf]
        %v723 = vld [vmem:[%s715 + $0x1c] sm:$0xf]
        %v724 = vld [vmem:[%s715 + $0x20] sm:$0xf]
        %v725 = vld [vmem:[%s715 + $0x24] sm:$0xf]
        %v726 = vld [vmem:[%s715 + $0x28] sm:$0xf]
        %v727 = vld [vmem:[%s715 + $0x2c] sm:$0xf]
        %v728 = vld [vmem:[%s715 + $0x30] sm:$0xf]
        %v729 = vld [vmem:[%s715 + $0x34] sm:$0xf]
        %v730 = vld [vmem:[%s715 + $0x38] sm:$0xf]
        %v731 = vld [vmem:[%s715 + $0x3c] sm:$0xf]
        %v732 = vld [vmem:[#allocation7] sm:$0xf]
        %v733 = vld [vmem:[#allocation7 + $0x4] sm:$0xf]
        %v734 = vld [vmem:[#allocation7 + $0x8] sm:$0xf]
        %v735 = vld [vmem:[#allocation7 + $0xc] sm:$0xf]
        %v736 = vld [vmem:[#allocation7 + $0x10] sm:$0xf]
        %v737 = vld [vmem:[#allocation7 + $0x14] sm:$0xf]
        %v738 = vld [vmem:[#allocation7 + $0x18] sm:$0xf]
        %v739 = vld [vmem:[#allocation7 + $0x1c] sm:$0xf]
        %v740 = vld [vmem:[#allocation7 + $0x20] sm:$0xf]
        %v741 = vld [vmem:[#allocation7 + $0x24] sm:$0xf]
        %v742 = vld [vmem:[#allocation7 + $0x28] sm:$0xf]
        %v743 = vld [vmem:[#allocation7 + $0x2c] sm:$0xf]
        %v744 = vld [vmem:[#allocation7 + $0x30] sm:$0xf]
        %v745 = vld [vmem:[#allocation7 + $0x34] sm:$0xf]
        %v746 = vld [vmem:[#allocation7 + $0x38] sm:$0xf]
        %v747 = vld [vmem:[#allocation7 + $0x3c] sm:$0xf]
        %v764 = vunpack.c.l.b16 %v732
        %v765 = vunpack.c.l.b16 %v733
        %v766 = vunpack.c.l.b16 %v734
        %v767 = vunpack.c.l.b16 %v735
        %v768 = vunpack.c.l.b16 %v736
        %v769 = vunpack.c.l.b16 %v737
        %v770 = vunpack.c.l.b16 %v738
        %v771 = vunpack.c.l.b16 %v739
        %v772 = vunpack.c.l.b16 %v740
        %v773 = vunpack.c.l.b16 %v741
        %v774 = vunpack.c.l.b16 %v742
        %v775 = vunpack.c.l.b16 %v743
        %v776 = vunpack.c.l.b16 %v744
        %v777 = vunpack.c.l.b16 %v745
        %v778 = vunpack.c.l.b16 %v746
        %v779 = vunpack.c.l.b16 %v747
        %v780 = vpack.c.b16 %v765, %v764
        %v781 = vpack.c.b16 %v767, %v766
        %v782 = vpack.c.b16 %v769, %v768
        %v783 = vpack.c.b16 %v771, %v770
        %v784 = vpack.c.b16 %v773, %v772
        %v785 = vpack.c.b16 %v775, %v774
        %v786 = vpack.c.b16 %v777, %v776
        %v787 = vpack.c.b16 %v779, %v778
        %796 = vmatprep.subr.bf16.mxu0 0
        %797 = vmatpush1.bf16.msra.mxu0 %v780
        %798 = vmatprep.subr.bf16.mxu0 0
        %799 = vmatpush1.bf16.msra.mxu0 %v781
        %800 = vmatprep.subr.bf16.mxu0 0
        %801 = vmatpush1.bf16.msra.mxu0 %v782
        %802 = vmatprep.subr.bf16.mxu0 0
        %803 = vmatpush1.bf16.msra.mxu0 %v783
        %804 = vmatprep.subr.bf16.mxu0 0
        %805 = vmatpush1.bf16.msra.mxu0 %v784
        %806 = vmatprep.subr.bf16.mxu0 0
        %807 = vmatpush1.bf16.msra.mxu0 %v785
        %808 = vmatprep.subr.bf16.mxu0 0
        %809 = vmatpush1.bf16.msra.mxu0 %v786
        %810 = vmatprep.subr.bf16.mxu0 0
        %811 = vmatpush1.bf16.msra.mxu0 %v787
        %812 = vmatprep.subr.bf16.mxu0 0
        %813 = vmatpush1.bf16.msra.mxu0 0
        %814 = vmatprep.subr.bf16.mxu0 0
        %815 = vmatpush1.bf16.msra.mxu0 0
        %816 = vmatprep.subr.bf16.mxu0 0
        %817 = vmatpush1.bf16.msra.mxu0 0
        %818 = vmatprep.subr.bf16.mxu0 0
        %819 = vmatpush1.bf16.msra.mxu0 0
        %820 = vmatprep.subr.bf16.mxu0 0
        %821 = vmatpush1.bf16.msra.mxu0 0
        %822 = vmatprep.subr.bf16.mxu0 0
        %823 = vmatpush1.bf16.msra.mxu0 0
        %824 = vmatprep.subr.bf16.mxu0 0
        %825 = vmatpush1.bf16.msra.mxu0 0
        %826 = vmatprep.subr.bf16.mxu0 0
        %827 = vmatpush1.bf16.msra.mxu0 0
        %828 = vmatprep.mubr.bf16.mxu0 0
        %829 = vmatmul.mubr.bf16.gmra.mrb[0].mxu0 %v714
        %v830 = vpop.f32.mrb[0].mxu0
        %v831 = vadd.f32 0.0, %v830
        %v832 = vpop.f32.mrb[0].mxu0
        %v833 = vpop.f32.mrb[0].mxu0
        %v834 = vadd.f32 0.0, %v833
        %v835 = vpop.f32.mrb[0].mxu0
        %836 = vdwg.mxu0
        %s837 = scalar_lea.vmem [#allocation7], 128
        %v838 = vld [vmem:[%s837] sm:$0xf]
        %v839 = vld [vmem:[%s837 + $0x4] sm:$0xf]
        %v840 = vld [vmem:[%s837 + $0x8] sm:$0xf]
        %v841 = vld [vmem:[%s837 + $0xc] sm:$0xf]
        %v842 = vld [vmem:[%s837 + $0x10] sm:$0xf]
        %v843 = vld [vmem:[%s837 + $0x14] sm:$0xf]
        %v844 = vld [vmem:[%s837 + $0x18] sm:$0xf]
        %v845 = vld [vmem:[%s837 + $0x1c] sm:$0xf]
        %v846 = vld [vmem:[%s837 + $0x20] sm:$0xf]
        %v847 = vld [vmem:[%s837 + $0x24] sm:$0xf]
        %v848 = vld [vmem:[%s837 + $0x28] sm:$0xf]
        %v849 = vld [vmem:[%s837 + $0x2c] sm:$0xf]
        %v850 = vld [vmem:[%s837 + $0x30] sm:$0xf]
        %v851 = vld [vmem:[%s837 + $0x34] sm:$0xf]
        %v852 = vld [vmem:[%s837 + $0x38] sm:$0xf]
        %v853 = vld [vmem:[%s837 + $0x3c] sm:$0xf]
        %v870 = vunpack.c.l.b16 %v838
        %v871 = vunpack.c.l.b16 %v839
        %v872 = vunpack.c.l.b16 %v840
        %v873 = vunpack.c.l.b16 %v841
        %v874 = vunpack.c.l.b16 %v842
        %v875 = vunpack.c.l.b16 %v843
        %v876 = vunpack.c.l.b16 %v844
        %v877 = vunpack.c.l.b16 %v845
        %v878 = vunpack.c.l.b16 %v846
        %v879 = vunpack.c.l.b16 %v847
        %v880 = vunpack.c.l.b16 %v848
        %v881 = vunpack.c.l.b16 %v849
        %v882 = vunpack.c.l.b16 %v850
        %v883 = vunpack.c.l.b16 %v851
        %v884 = vunpack.c.l.b16 %v852
        %v885 = vunpack.c.l.b16 %v853
        %v886 = vpack.c.b16 %v871, %v870
        %v887 = vpack.c.b16 %v873, %v872
        %v888 = vpack.c.b16 %v875, %v874
        %v889 = vpack.c.b16 %v877, %v876
        %v890 = vpack.c.b16 %v879, %v878
        %v891 = vpack.c.b16 %v881, %v880
        %v892 = vpack.c.b16 %v883, %v882
        %v893 = vpack.c.b16 %v885, %v884
        %902 = vmatprep.subr.bf16.mxu0 0
        %903 = vmatpush1.bf16.msra.mxu0 %v886
        %904 = vmatprep.subr.bf16.mxu0 0
        %905 = vmatpush1.bf16.msra.mxu0 %v887
        %906 = vmatprep.subr.bf16.mxu0 0
        %907 = vmatpush1.bf16.msra.mxu0 %v888
        %908 = vmatprep.subr.bf16.mxu0 0
        %909 = vmatpush1.bf16.msra.mxu0 %v889
        %910 = vmatprep.subr.bf16.mxu0 0
        %911 = vmatpush1.bf16.msra.mxu0 %v890
        %912 = vmatprep.subr.bf16.mxu0 0
        %913 = vmatpush1.bf16.msra.mxu0 %v891
        %914 = vmatprep.subr.bf16.mxu0 0
        %915 = vmatpush1.bf16.msra.mxu0 %v892
        %916 = vmatprep.subr.bf16.mxu0 0
        %917 = vmatpush1.bf16.msra.mxu0 %v893
        %918 = vmatprep.subr.bf16.mxu0 0
        %919 = vmatpush1.bf16.msra.mxu0 0
        %920 = vmatprep.subr.bf16.mxu0 0
        %921 = vmatpush1.bf16.msra.mxu0 0
        %922 = vmatprep.subr.bf16.mxu0 0
        %923 = vmatpush1.bf16.msra.mxu0 0
        %924 = vmatprep.subr.bf16.mxu0 0
        %925 = vmatpush1.bf16.msra.mxu0 0
        %926 = vmatprep.subr.bf16.mxu0 0
        %927 = vmatpush1.bf16.msra.mxu0 0
        %928 = vmatprep.subr.bf16.mxu0 0
        %929 = vmatpush1.bf16.msra.mxu0 0
        %930 = vmatprep.subr.bf16.mxu0 0
        %931 = vmatpush1.bf16.msra.mxu0 0
        %932 = vmatprep.subr.bf16.mxu0 0
        %933 = vmatpush1.bf16.msra.mxu0 0
        %934 = vmatprep.mubr.bf16.mxu0 0
        %935 = vmatmul.mubr.bf16.gmra.mrb[0].mxu0 %v714
        %v936 = vpop.f32.mrb[0].mxu0
        %v937 = vadd.f32 0.0, %v936
        %v938 = vpop.f32.mrb[0].mxu0
        %v939 = vpop.f32.mrb[0].mxu0
        %v940 = vadd.f32 0.0, %v939
        %v941 = vpop.f32.mrb[0].mxu0
        %942 = vdwg.mxu0
        %v943 = vrot.slane %v831, 7
        %v944 = vrot.slane %v834, 7
        %v945 = vsel %vm591, %v943, %v944
        %v946 = vsel %vm591, %v944, %v943
        %v947 = vsel %vm357, %v946, 0.0
        %v948 = vsel %vm358, %v945, 0.0
        %v965 = vunpack.c.l.b16 %v716
        %v966 = vunpack.c.l.b16 %v717
        %v967 = vunpack.c.l.b16 %v718
        %v968 = vunpack.c.l.b16 %v719
        %v969 = vunpack.c.l.b16 %v720
        %v970 = vunpack.c.l.b16 %v721
        %v971 = vunpack.c.l.b16 %v722
        %v972 = vunpack.c.l.b16 %v723
        %v973 = vunpack.c.l.b16 %v724
        %v974 = vunpack.c.l.b16 %v725
        %v975 = vunpack.c.l.b16 %v726
        %v976 = vunpack.c.l.b16 %v727
        %v977 = vunpack.c.l.b16 %v728
        %v978 = vunpack.c.l.b16 %v729
        %v979 = vunpack.c.l.b16 %v730
        %v980 = vunpack.c.l.b16 %v731
        %v981 = vpack.c.b16 %v966, %v965
        %v982 = vpack.c.b16 %v968, %v967
        %v983 = vpack.c.b16 %v970, %v969
        %v984 = vpack.c.b16 %v972, %v971
        %v985 = vpack.c.b16 %v974, %v973
        %v986 = vpack.c.b16 %v976, %v975
        %v987 = vpack.c.b16 %v978, %v977
        %v988 = vpack.c.b16 %v980, %v979
        %997 = vmatprep.subr.bf16.mxu0 0
        %998 = vmatpush1.bf16.msra.mxu0 %v981
        %999 = vmatprep.subr.bf16.mxu0 0
        %1000 = vmatpush1.bf16.msra.mxu0 %v982
        %1001 = vmatprep.subr.bf16.mxu0 0
        %1002 = vmatpush1.bf16.msra.mxu0 %v983
        %1003 = vmatprep.subr.bf16.mxu0 0
        %1004 = vmatpush1.bf16.msra.mxu0 %v984
        %1005 = vmatprep.subr.bf16.mxu0 0
        %1006 = vmatpush1.bf16.msra.mxu0 %v985
        %1007 = vmatprep.subr.bf16.mxu0 0
        %1008 = vmatpush1.bf16.msra.mxu0 %v986
        %1009 = vmatprep.subr.bf16.mxu0 0
        %1010 = vmatpush1.bf16.msra.mxu0 %v987
        %1011 = vmatprep.subr.bf16.mxu0 0
        %1012 = vmatpush1.bf16.msra.mxu0 %v988
        %1013 = vmatprep.subr.bf16.mxu0 0
        %1014 = vmatpush1.bf16.msra.mxu0 0
        %1015 = vmatprep.subr.bf16.mxu0 0
        %1016 = vmatpush1.bf16.msra.mxu0 0
        %1017 = vmatprep.subr.bf16.mxu0 0
        %1018 = vmatpush1.bf16.msra.mxu0 0
        %1019 = vmatprep.subr.bf16.mxu0 0
        %1020 = vmatpush1.bf16.msra.mxu0 0
        %1021 = vmatprep.subr.bf16.mxu0 0
        %1022 = vmatpush1.bf16.msra.mxu0 0
        %1023 = vmatprep.subr.bf16.mxu0 0
        %1024 = vmatpush1.bf16.msra.mxu0 0
        %1025 = vmatprep.subr.bf16.mxu0 0
        %1026 = vmatpush1.bf16.msra.mxu0 0
        %1027 = vmatprep.subr.bf16.mxu0 0
        %1028 = vmatpush1.bf16.msra.mxu0 0
        %1029 = vmatprep.mubr.bf16.mxu0 0
        %1030 = vmatmul.mubr.bf16.gmra.mrb[0].mxu0 %v714
        %v1031 = vpop.f32.mrb[0].mxu0
        %v1032 = vadd.f32 %v947, %v1031
        %v1033 = vpop.f32.mrb[0].mxu0
        %v1034 = vpop.f32.mrb[0].mxu0
        %v1035 = vadd.f32 %v948, %v1034
        %v1036 = vpop.f32.mrb[0].mxu0
        %1037 = vdwg.mxu0
        %v1038 = vrot.slane %v937, 1
        %v1039 = vrot.slane %v940, 1
        %v1040 = vsel %vm687, %v1038, %v1039
        %v1041 = vsel %vm687, %v1039, %v1038
        %v1042 = vsel %vm359, %v1040, 0.0
        %v1043 = vsel %vm360, %v1041, 0.0
        %v1044 = vadd.f32 %v1032, %v1042
        %v1045 = vadd.f32 %v1035, %v1043
        %v1046 = vld [vmem:[%s5] sm:$0x1]
        %v1048 = vlaneseq
        %v1049 = vshrl.u32 %v1048, 7
        %v1050 = vsub.s32 0, %v1049
        %v1051 = vrot.slane %v1046, %v1050
        %v1053 = vmul.f32 %v1044, %v1051
        %v1054 = vmul.f32 %v1045, %v1051
        %v1055 = vld [vmem:[%s6] sm:$0x1]
        %v1057 = vlaneseq
        %v1058 = vshrl.u32 %v1057, 7
        %v1059 = vsub.s32 0, %v1058
        %v1060 = vrot.slane %v1055, %v1059
        %v1062 = vadd.f32 %v1053, %v1060
        %v1063 = vadd.f32 %v1054, %v1060
        %v1064 = vadd.f32 %v1062, %v327
        %v1065 = vadd.f32 %v1063, %v328
        %v1066 = vmax.f32 %v1064, 0.0
        %v1067 = vmax.f32 %v1065, 0.0
        %1068 = vst [vmem:[%s325] sm:$0xff] %v1066
        %1069 = vst [vmem:[%s325 + $0x8] sm:$0xff] %v1067
        %s1070 = sand.u32 %s185, 1
        %s1071 = scalar_lea.sflag [#allocation4], %s1070
        %s1072 = sand.u32 %s185, 1
        %s1073 = smul.addr %s1072, 16
        %s1074 = scalar_lea.vmem [#allocation8], %s1073
        // Predicated region
        $region61: #{tpu_custom_call.1} parent=47 // pred_check
          %p1075 = pneg %p195
        $region62: #{tpu_custom_call.1} parent=47 // pred_check_branch
          %1077 = sbr.rel (%p1075) target = $region64
        $region63: #{tpu_custom_call.1} parent=47 // pred_region
          %s1079 = ssub.s32 256, 256
          %1080 = vsyncadd %s1071, %s1079
          %s1081 = smul.addr %s25, 2
          %s1082 = smul.addr %s1081, 128
          %s1083 = scalar_lea.hbm %s7, %s1082
          %s1084 = sshll.u32 %s1074, 4
          %s1085 = int_to_ptr.vmem [resolvable:$true] %s1084
          %1090 = dma.vmem_to_hbm [thread:$0]  %s1085, 256, %s1083, %s1071, 128, 128, 8
        $region64: #{tpu_custom_call.1} parent=47 // pred_fallthru
          _
      $region48: #{tpu_custom_call.1} parent=5 // pred_fallthru
        _
      %p1091 = scmp.le.s32.totalorder 2, %s20
      // Predicated region
      $region65: #{tpu_custom_call.1} parent=5 // pred_check
        %p1092 = pneg %p1091
      $region66: #{tpu_custom_call.1} parent=5 // pred_check_branch
        %1094 = sbr.rel (%p1092) target = $region68
      $region67: #{tpu_custom_call.1} parent=5 // pred_region
        %s1095 = ssub.s32 %s20, 2
        // Predicated region
        $region69: #{tpu_custom_call.1} parent=67 // pred_check
          %p1096 = pneg %p201
        $region70: #{tpu_custom_call.1} parent=67 // pred_check_branch
          %1098 = sbr.rel (%p1096) target = $region72
        $region71: #{tpu_custom_call.1} parent=67 // pred_region
          %s1099 = sand.u32 %s186, 1
          %s1100 = scalar_lea.sflag [#allocation4], %s1099
          %s1101 = sand.u32 %s186, 1
          %s1102 = smul.addr %s1101, 16
          %s1103 = scalar_lea.vmem [#allocation8], %s1102
          %1104 = dma.done %s1100, 256
        $region72: #{tpu_custom_call.1} parent=67 // pred_fallthru
          _
      $region68: #{tpu_custom_call.1} parent=5 // pred_fallthru
        _
    $region6: #{tpu_custom_call.1} parent=1 // loop_footer
      %s24 = sadd.s32 1, %s20
    $region7: #{tpu_custom_call.1} parent=1 // loop_footer_branch
      %19 = sbr.rel target = $region3
    $region8: #{tpu_custom_call.1} parent=1 // loop_exit
      _
    %1105 = vsyncpa [#allocation3], 1
    %s1106 = scalar_lea.sflag [#allocation3], 1
    %1107 = vsyncpa %s1106, 1
    %1108 = vsyncpa [#allocation6], 1
    %1109 = vsyncpa [#allocation4], 1
    %s1110 = scalar_lea.sflag [#allocation4], 1
    %1111 = vsyncpa %s1110, 1

</llo_original>
